<compile_context>
chip_gen: v6e
topology: v6e:2x2x1
jax: 0.10.0
libtpu: 0.0.40
codegen_flags: <defaults>
</compile_context>

<pallas_src>
import jax
import jax.numpy as jnp
from jax.experimental import pallas as pl
from jax.experimental.pallas import tpu as pltpu


def _round_up(x, m):
    return ((x + m - 1) // m) * m


def _zero_conv1d_mxu_kernel(x_ref, w_ref, b_ref, o_ref):
    # x_ref: (C_in, TL), w_ref: (C_out, C_in), b_ref: (C_out, 1), o_ref: (C_out, TL)
    y = jnp.dot(w_ref[...], x_ref[...], preferred_element_type=jnp.float32) + b_ref[...]
    o_ref[...] = y.astype(o_ref.dtype)


def _zero_conv1d_vpu_kernel(x_ref, w_ref, b_ref, o_ref):
    # Tiny-channel path: contraction done with broadcast-FMAs on the VPU (no MXU relayout).
    c_out, c_in = w_ref.shape
    tl = x_ref.shape[-1]
    x = x_ref[...].astype(jnp.float32)     # (C_in, TL)
    w = w_ref[...].astype(jnp.float32)     # (C_out, C_in)
    acc = jnp.zeros((c_out, tl), jnp.float32) + b_ref[...]   # lane-broadcast bias
    for ci in range(c_in):                 # static, tiny trip count
        acc = acc + w[:, ci:ci + 1] * x[ci:ci + 1, :]
    o_ref[...] = acc.astype(o_ref.dtype)


def zero_conv1d(x, weight, bias, *, tile_l=512):
    """x: (B, C_in, L); weight: (C_out, C_in, 1) [PyTorch conv weight]; bias: (C_out,)."""
    B, C_in, L = x.shape
    C_out = weight.shape[0]

    w2d = weight.reshape(C_out, C_in).astype(x.dtype)
    b2d = bias.reshape(C_out, 1).astype(jnp.float32)

    # Sublane-align channel dims (8 for 32-bit, 16 for 16-bit, ...).
    itemsize = jnp.dtype(x.dtype).itemsize
    c_mult = max(8, 8 * (4 // max(1, itemsize)))
    C_in_p = _round_up(C_in, c_mult)
    C_out_p = _round_up(C_out, c_mult)

    # Lane-dense L tiling: tile is a multiple of 128, padded L is a multiple of the tile.
    L_tile = min(_round_up(tile_l, 128), _round_up(L, 128))
    L_pad = _round_up(L, L_tile)

    x_p = x
    if C_in_p != C_in or L_pad != L:
        x_p = jnp.pad(x, ((0, 0), (0, C_in_p - C_in), (0, L_pad - L)))
    w_p = w2d
    if C_out_p != C_out or C_in_p != C_in:
        w_p = jnp.pad(w2d, ((0, C_out_p - C_out), (0, C_in_p - C_in)))
    b_p = b2d
    if C_out_p != C_out:
        b_p = jnp.pad(b2d, ((0, C_out_p - C_out), (0, 0)))

    kernel = (_zero_conv1d_vpu_kernel
              if max(C_in_p, C_out_p) <= 8
              else _zero_conv1d_mxu_kernel)

    grid = (B, L_pad // L_tile)

    out_p = pl.pallas_call(
        kernel,
        out_shape=jax.ShapeDtypeStruct((B, C_out_p, L_pad), x.dtype),
        grid_spec=pltpu.PrefetchScalarGridSpec(
            num_scalar_prefetch=0,
            grid=grid,
            in_specs=[
                # x: one batch element, one L tile; batch dim squeezed away.
                pl.BlockSpec((pl.Squeezed(), C_in_p, L_tile), lambda b, l: (b, 0, l)),
                # weight / bias: constant index map -> DMA'd once, resident in VMEM.
                pl.BlockSpec((C_out_p, C_in_p), lambda b, l: (0, 0)),
                pl.BlockSpec((C_out_p, 1), lambda b, l: (0, 0)),
            ],
            out_specs=pl.BlockSpec((pl.Squeezed(), C_out_p, L_tile), lambda b, l: (b, 0, l)),
        ),
        compiler_params=pltpu.CompilerParams(
            dimension_semantics=("parallel", "parallel"),
        ),
        cost_estimate=pl.CostEstimate(
            flops=2 * B * C_out * C_in * L,
            transcendentals=0,
            bytes_accessed=(itemsize * B * L * (C_in + C_out)
                            + itemsize * C_out * C_in + 4 * C_out),
        ),
    )(x_p, w_p, b_p)

    # Strip channel / length padding (plain-JAX glue).
    return out_p[:, :C_out, :L]


if __name__ == "__main__":
    key = jax.random.PRNGKey(0)
    B, C_in, C_out, L = 2, 4, 4, 16
    kx, kw, kb = jax.random.split(key, 3)
    x = jax.random.normal(kx, (B, C_in, L), dtype=jnp.float32)

    # (1) Module-faithful parameters: ZeroConv1d zero-inits weight and bias -> output is zero.
    w_zero = jnp.zeros((C_out, C_in, 1), dtype=jnp.float32)
    b_zero = jnp.zeros((C_out,), dtype=jnp.float32)
    out_zero = jax.block_until_ready(zero_conv1d(x, w_zero, b_zero))
    assert out_zero.shape == (B, C_out, L)
    assert jnp.allclose(out_zero, 0.0), "zero-init path mismatch"

    # (2) Random parameters to actually exercise the contraction, bias broadcast, index maps
    #     (tiny channels -> VPU path).
    w_rnd = jax.random.normal(kw, (C_out, C_in, 1), dtype=jnp.float32)
    b_rnd = jax.random.normal(kb, (C_out,), dtype=jnp.float32)
    out_rnd = jax.block_until_ready(zero_conv1d(x, w_rnd, b_rnd))
    ref = jnp.einsum("oc,bcl->bol", w_rnd.reshape(C_out, C_in), x) + b_rnd[None, :, None]
    assert jnp.allclose(out_rnd, ref, atol=1e-5, rtol=1e-5), "VPU path mismatch"

    # (3) Larger channels + ragged L to exercise the MXU path and the L-tiling / padding.
    B2, C_in2, C_out2, L2 = 2, 16, 24, 300
    k2x, k2w, k2b = jax.random.split(jax.random.PRNGKey(1), 3)
    x2 = jax.random.normal(k2x, (B2, C_in2, L2), dtype=jnp.float32)
    w2 = jax.random.normal(k2w, (C_out2, C_in2, 1), dtype=jnp.float32)
    b2 = jax.random.normal(k2b, (C_out2,), dtype=jnp.float32)
    out2 = jax.block_until_ready(zero_conv1d(x2, w2, b2))
    ref2 = jnp.einsum("oc,bcl->bol", w2.reshape(C_out2, C_in2), x2) + b2[None, :, None]
    assert jnp.allclose(out2, ref2, atol=1e-4, rtol=1e-4), "MXU path mismatch"

    print("KERNEL_OK")
</pallas_src>

<mosaic_0001>
module attributes {stable_mosaic.version = 11 : i64} {
  func.func @_zero_conv1d_vpu_kernel(%arg0: i32, %arg1: i32, %arg2: memref<1x8x128xf32, #tpu.memory_space<vmem>>, %arg3: memref<8x8xf32, #tpu.memory_space<vmem>>, %arg4: memref<8x1xf32, #tpu.memory_space<vmem>>, %arg5: memref<1x8x128xf32, #tpu.memory_space<vmem>>) attributes {dimension_semantics = [#tpu.dimension_semantics<parallel>, #tpu.dimension_semantics<parallel>], iteration_bounds = array<i64: 2, 1>, scalar_prefetch = 0 : i64, scratch_operands = 0 : i64, tpu.core_type = #tpu.core_type<tc>, window_params = [{transform_indices = @transform_0, window_bounds = array<i64: 1, 8, 128>}, {pipeline_mode = #tpu.pipeline_mode<synchronous>, transform_indices = @transform_1, window_bounds = array<i64: 8, 8>}, {pipeline_mode = #tpu.pipeline_mode<synchronous>, transform_indices = @transform_2, window_bounds = array<i64: 8, 1>}, {transform_indices = @transform_3, window_bounds = array<i64: 1, 8, 128>}]} {
    %c0 = arith.constant 0 : index
    %c0_0 = arith.constant 0 : index
    %c0_1 = arith.constant 0 : index
    %0 = vector.load %arg2[%c0, %c0_0, %c0_1] : memref<1x8x128xf32, #tpu.memory_space<vmem>>, vector<1x8x128xf32>
    %1 = vector.shape_cast %0 : vector<1x8x128xf32> to vector<8x128xf32>
    %c0_2 = arith.constant 0 : index
    %c0_3 = arith.constant 0 : index
    %2 = vector.load %arg3[%c0_2, %c0_3] : memref<8x8xf32, #tpu.memory_space<vmem>>, vector<8x8xf32>
    %cst = arith.constant 0.000000e+00 : f32
    %3 = vector.broadcast %cst : f32 to vector<8x128xf32>
    %c0_4 = arith.constant 0 : index
    %c0_5 = arith.constant 0 : index
    %4 = vector.load %arg4[%c0_4, %c0_5] : memref<8x1xf32, #tpu.memory_space<vmem>>, vector<8x1xf32>
    %5 = vector.broadcast %4 : vector<8x1xf32> to vector<8x128xf32>
    %6 = arith.addf %3, %5 : vector<8x128xf32>
    %7 = vector.extract_strided_slice %2 {offsets = [0, 0], sizes = [8, 1], strides = [1, 1]} : vector<8x8xf32> to vector<8x1xf32>
    %8 = vector.extract_strided_slice %1 {offsets = [0, 0], sizes = [1, 128], strides = [1, 1]} : vector<8x128xf32> to vector<1x128xf32>
    %9 = vector.broadcast %7 : vector<8x1xf32> to vector<8x128xf32>
    %10 = vector.broadcast %8 : vector<1x128xf32> to vector<8x128xf32>
    %11 = arith.mulf %9, %10 : vector<8x128xf32>
    %12 = arith.addf %6, %11 : vector<8x128xf32>
    %13 = vector.extract_strided_slice %2 {offsets = [0, 1], sizes = [8, 1], strides = [1, 1]} : vector<8x8xf32> to vector<8x1xf32>
    %14 = vector.extract_strided_slice %1 {offsets = [1, 0], sizes = [1, 128], strides = [1, 1]} : vector<8x128xf32> to vector<1x128xf32>
    %15 = vector.broadcast %13 : vector<8x1xf32> to vector<8x128xf32>
    %16 = vector.broadcast %14 : vector<1x128xf32> to vector<8x128xf32>
    %17 = arith.mulf %15, %16 : vector<8x128xf32>
    %18 = arith.addf %12, %17 : vector<8x128xf32>
    %19 = vector.extract_strided_slice %2 {offsets = [0, 2], sizes = [8, 1], strides = [1, 1]} : vector<8x8xf32> to vector<8x1xf32>
    %20 = vector.extract_strided_slice %1 {offsets = [2, 0], sizes = [1, 128], strides = [1, 1]} : vector<8x128xf32> to vector<1x128xf32>
    %21 = vector.broadcast %19 : vector<8x1xf32> to vector<8x128xf32>
    %22 = vector.broadcast %20 : vector<1x128xf32> to vector<8x128xf32>
    %23 = arith.mulf %21, %22 : vector<8x128xf32>
    %24 = arith.addf %18, %23 : vector<8x128xf32>
    %25 = vector.extract_strided_slice %2 {offsets = [0, 3], sizes = [8, 1], strides = [1, 1]} : vector<8x8xf32> to vector<8x1xf32>
    %26 = vector.extract_strided_slice %1 {offsets = [3, 0], sizes = [1, 128], strides = [1, 1]} : vector<8x128xf32> to vector<1x128xf32>
    %27 = vector.broadcast %25 : vector<8x1xf32> to vector<8x128xf32>
    %28 = vector.broadcast %26 : vector<1x128xf32> to vector<8x128xf32>
    %29 = arith.mulf %27, %28 : vector<8x128xf32>
    %30 = arith.addf %24, %29 : vector<8x128xf32>
    %31 = vector.extract_strided_slice %2 {offsets = [0, 4], sizes = [8, 1], strides = [1, 1]} : vector<8x8xf32> to vector<8x1xf32>
    %32 = vector.extract_strided_slice %1 {offsets = [4, 0], sizes = [1, 128], strides = [1, 1]} : vector<8x128xf32> to vector<1x128xf32>
    %33 = vector.broadcast %31 : vector<8x1xf32> to vector<8x128xf32>
    %34 = vector.broadcast %32 : vector<1x128xf32> to vector<8x128xf32>
    %35 = arith.mulf %33, %34 : vector<8x128xf32>
    %36 = arith.addf %30, %35 : vector<8x128xf32>
    %37 = vector.extract_strided_slice %2 {offsets = [0, 5], sizes = [8, 1], strides = [1, 1]} : vector<8x8xf32> to vector<8x1xf32>
    %38 = vector.extract_strided_slice %1 {offsets = [5, 0], sizes = [1, 128], strides = [1, 1]} : vector<8x128xf32> to vector<1x128xf32>
    %39 = vector.broadcast %37 : vector<8x1xf32> to vector<8x128xf32>
    %40 = vector.broadcast %38 : vector<1x128xf32> to vector<8x128xf32>
    %41 = arith.mulf %39, %40 : vector<8x128xf32>
    %42 = arith.addf %36, %41 : vector<8x128xf32>
    %43 = vector.extract_strided_slice %2 {offsets = [0, 6], sizes = [8, 1], strides = [1, 1]} : vector<8x8xf32> to vector<8x1xf32>
    %44 = vector.extract_strided_slice %1 {offsets = [6, 0], sizes = [1, 128], strides = [1, 1]} : vector<8x128xf32> to vector<1x128xf32>
    %45 = vector.broadcast %43 : vector<8x1xf32> to vector<8x128xf32>
    %46 = vector.broadcast %44 : vector<1x128xf32> to vector<8x128xf32>
    %47 = arith.mulf %45, %46 : vector<8x128xf32>
    %48 = arith.addf %42, %47 : vector<8x128xf32>
    %49 = vector.extract_strided_slice %2 {offsets = [0, 7], sizes = [8, 1], strides = [1, 1]} : vector<8x8xf32> to vector<8x1xf32>
    %50 = vector.extract_strided_slice %1 {offsets = [7, 0], sizes = [1, 128], strides = [1, 1]} : vector<8x128xf32> to vector<1x128xf32>
    %51 = vector.broadcast %49 : vector<8x1xf32> to vector<8x128xf32>
    %52 = vector.broadcast %50 : vector<1x128xf32> to vector<8x128xf32>
    %53 = arith.mulf %51, %52 : vector<8x128xf32>
    %54 = arith.addf %48, %53 : vector<8x128xf32>
    %c0_6 = arith.constant 0 : index
    %c0_7 = arith.constant 0 : index
    %c0_8 = arith.constant 0 : index
    %55 = vector.load %arg5[%c0_6, %c0_7, %c0_8] : memref<1x8x128xf32, #tpu.memory_space<vmem>>, vector<1x8x128xf32>
    %56 = vector.shape_cast %55 : vector<1x8x128xf32> to vector<8x128xf32>
    %57 = vector.shape_cast %54 : vector<8x128xf32> to vector<1x8x128xf32>
    tpu.vector_store %arg5[%c0_6, %c0_7, %c0_8], %57 {strides = array<i32>} : memref<1x8x128xf32, #tpu.memory_space<vmem>>, vector<1x8x128xf32>,
    return
  }
  func.func @transform_0(%arg0: i32, %arg1: i32) -> (i32, i32, i32) {
    %c0_i32 = arith.constant 0 : i32
    %c0_i32_0 = arith.constant 0 : i32
    return %arg0, %c0_i32, %arg1 : i32, i32, i32
  }
  func.func @transform_1(%arg0: i32, %arg1: i32) -> (i32, i32) {
    %c0_i32 = arith.constant 0 : i32
    %c0_i32_0 = arith.constant 0 : i32
    %c0_i32_1 = arith.constant 0 : i32
    return %c0_i32, %c0_i32_0 : i32, i32
  }
  func.func @transform_2(%arg0: i32, %arg1: i32) -> (i32, i32) {
    %c0_i32 = arith.constant 0 : i32
    %c0_i32_0 = arith.constant 0 : i32
    %c0_i32_1 = arith.constant 0 : i32
    return %c0_i32, %c0_i32_0 : i32, i32
  }
  func.func @transform_3(%arg0: i32, %arg1: i32) -> (i32, i32, i32) {
    %c0_i32 = arith.constant 0 : i32
    %c0_i32_0 = arith.constant 0 : i32
    return %arg0, %c0_i32, %arg1 : i32, i32, i32
  }
}

</mosaic_0001>

<llo_original>
// kernel: tpu_custom_call.1
$region0: #{tpu_custom_call.1}
  #allocation0 [shape = 'u32[]', space=smem, size = 0x4, offset = 0x4, fixed_abs, tag = 'smem constant byte address 0x4 - core index']
  #allocation1 [shape = 'u32[144,128]{1,0:T(1,128)}', space=vmem, size = 0x12000, scoped, tag = 'internal scratch']
  %s0 = inlined_call_operand.hbm [shape: f32[2,8,128], index: 0, kind: input, shape index: {}]
  %s1 = inlined_call_operand.vmem [shape: f32[8,8], index: 1, kind: input, shape index: {}]
  %s2 = inlined_call_operand.vmem [shape: f32[8,1], index: 2, kind: input, shape index: {}]
  %s3 = inlined_call_operand.hbm [shape: f32[2,8,128], index: 3, kind: output, shape index: {}]
  %s4 = sld [smem:[#allocation0]]
  $region49: #{tpu_custom_call.1} parent=0
    _
  %s6 = ssub.s32 1, %s4
  %s7 = scalar_select 0, %s6, %s4
  $region1: #{tpu_custom_call.1} parent=0
    #allocation2 [shape = 'u8[8192]{0}', space=vmem, size = 0x2000, scoped, tag = 'input window, operand 0']
    #allocation3 [shape = 's32[2]{0}', space=sflag, size = 0x8, scoped, tag = 'scoped memory for tpu_custom_call.1']
    #allocation4 [shape = 's32[2]{0}', space=sflag, size = 0x8, scoped, tag = 'scoped memory for tpu_custom_call.1']
    #allocation5 [shape = 'u8[8192]{0}', space=vmem, size = 0x2000, scoped, tag = 'output window, operand 0']
    %8 = vsyncpa [#allocation3], 0
    %s9 = scalar_lea.sflag [#allocation3], 1
    %10 = vsyncpa %s9, 0
    %11 = vsyncpa [#allocation4], 0
    %s12 = scalar_lea.sflag [#allocation4], 1
    %13 = vsyncpa %s12, 0
    loop: start=0, step=1, limit=4
    $region2: #{tpu_custom_call.1} parent=1 // loop_pre_header
      _
    $region3: #{tpu_custom_call.1} parent=1 // loop_header
      %s15 = sphi 0, %s19
      %p16 = scmp.ge.s32.totalorder %s15, 4
      %s22 = sphi 0, %s34
      %s23 = sphi 0, %s30
      %s24 = sphi 0, %s22
      %s25 = sphi 0, %s23
      %s26 = sphi 0, %s24
      %s27 = sphi 0, %s25
      %s39 = sphi 0, %s41
      %s42 = sphi 0, %s39
      %s43 = sphi 0, %s42
      %s59 = sphi 0, %s43
      %s63 = sphi 0, %s63
      %s65 = sphi 0, %s63
      %s66 = sphi 0, %s65
      %s80 = sphi 0, %s66
      %s84 = sphi 0, %s84
      %s86 = sphi 0, %s84
      %s87 = sphi 0, %s86
      %s101 = sphi 0, %s87
      %s109 = sphi 0, %s111
      %s112 = sphi 0, %s109
      %s113 = sphi 0, %s112
      %s129 = sphi 0, %s113
    $region4: #{tpu_custom_call.1} parent=1 // loop_header_branch
      %18 = sbr.rel (%p16) target = $region8
    $region5: #{tpu_custom_call.1} parent=1 // loop_body
      %s20 = ssub.s32 %s15, 1
      %s21 = ssub.s32 %s15, 2
      %s28 = sadd.s32 1, %s23
      %p29 = scmp.ge.s32.totalorder %s28, 1
      %s30 = scalar_select %p29, 0, %s28
      %s31 = sadd.s32 1, %s22
      %s32 = scalar_select %p29, %s31, %s22
      %p33 = scmp.ge.s32.totalorder %s32, 2
      %s34 = scalar_select %p33, 0, %s32
      %s35 = ssub.s32 %s22, %s34
      %s36 = ssub.s32 %s23, %s30
      %s37 = sor.u32 %s35, %s36
      %p38 = scmp.eq.s32.totalorder %s37, 0
      %s40 = sadd.s32 %s39, 1
      %s41 = scalar_select %p38, %s39, %s40
      %p44 = pneg %p38
      %p45 = scmp.eq.s32.totalorder %s15, 1
      %p46 = por %p44, %p45
      %p47 = scmp.ne.s32.totalorder %s39, %s42
      %p48 = scmp.eq.s32.totalorder %s15, 0
      %p49 = por %p47, %p48
      %p50 = scmp.ne.s32.totalorder %s39, %s42
      %p51 = scmp.eq.s32.totalorder %s20, 1
      %p52 = por %p50, %p51
      %p53 = scmp.ne.s32.totalorder %s42, %s43
      %p54 = scmp.eq.s32.totalorder %s20, 0
      %p55 = por %p53, %p54
      %p56 = scmp.ne.s32.totalorder %s42, %s43
      %p57 = scmp.eq.s32.totalorder %s21, 1
      %p58 = por %p56, %p57
      %p60 = scmp.ne.s32.totalorder %s43, %s59
      %p61 = scmp.eq.s32.totalorder %s21, 0
      %p62 = por %p60, %p61
      %s64 = sadd.s32 %s63, 1
      %p67 = scmp.eq.s32.totalorder %s15, 1
      %p68 = scmp.ne.s32.totalorder %s63, %s65
      %p69 = scmp.eq.s32.totalorder %s15, 0
      %p70 = por %p68, %p69
      %p71 = scmp.ne.s32.totalorder %s63, %s65
      %p72 = scmp.eq.s32.totalorder %s20, 1
      %p73 = por %p71, %p72
      %p74 = scmp.ne.s32.totalorder %s65, %s66
      %p75 = scmp.eq.s32.totalorder %s20, 0
      %p76 = por %p74, %p75
      %p77 = scmp.ne.s32.totalorder %s65, %s66
      %p78 = scmp.eq.s32.totalorder %s21, 1
      %p79 = por %p77, %p78
      %p81 = scmp.ne.s32.totalorder %s66, %s80
      %p82 = scmp.eq.s32.totalorder %s21, 0
      %p83 = por %p81, %p82
      %s85 = sadd.s32 %s84, 1
      %p88 = scmp.eq.s32.totalorder %s15, 1
      %p89 = scmp.ne.s32.totalorder %s84, %s86
      %p90 = scmp.eq.s32.totalorder %s15, 0
      %p91 = por %p89, %p90
      %p92 = scmp.ne.s32.totalorder %s84, %s86
      %p93 = scmp.eq.s32.totalorder %s20, 1
      %p94 = por %p92, %p93
      %p95 = scmp.ne.s32.totalorder %s86, %s87
      %p96 = scmp.eq.s32.totalorder %s20, 0
      %p97 = por %p95, %p96
      %p98 = scmp.ne.s32.totalorder %s86, %s87
      %p99 = scmp.eq.s32.totalorder %s21, 1
      %p100 = por %p98, %p99
      %p102 = scmp.ne.s32.totalorder %s87, %s101
      %p103 = scmp.eq.s32.totalorder %s21, 0
      %p104 = por %p102, %p103
      %s105 = ssub.s32 %s22, %s34
      %s106 = ssub.s32 %s23, %s30
      %s107 = sor.u32 %s105, %s106
      %p108 = scmp.eq.s32.totalorder %s107, 0
      %s110 = sadd.s32 %s109, 1
      %s111 = scalar_select %p108, %s109, %s110
      %p114 = pneg %p108
      %p115 = scmp.eq.s32.totalorder %s15, 1
      %p116 = por %p114, %p115
      %p117 = scmp.ne.s32.totalorder %s109, %s112
      %p118 = scmp.eq.s32.totalorder %s15, 0
      %p119 = por %p117, %p118
      %p120 = scmp.ne.s32.totalorder %s109, %s112
      %p121 = scmp.eq.s32.totalorder %s20, 1
      %p122 = por %p120, %p121
      %p123 = scmp.ne.s32.totalorder %s112, %s113
      %p124 = scmp.eq.s32.totalorder %s20, 0
      %p125 = por %p123, %p124
      %p126 = scmp.ne.s32.totalorder %s112, %s113
      %p127 = scmp.eq.s32.totalorder %s21, 1
      %p128 = por %p126, %p127
      %p130 = scmp.ne.s32.totalorder %s113, %s129
      %p131 = scmp.eq.s32.totalorder %s21, 0
      %p132 = por %p130, %p131
      %p133 = scmp.le.s32.totalorder 1, %s15
      %p134 = scmp.lt.s32.totalorder %s15, 3
      %p135 = pnand %p133, %p134
      %p136 = pneg %p135
      // Predicated region
      $region9: #{tpu_custom_call.1} parent=5 // pred_check
        _
      $region10: #{tpu_custom_call.1} parent=5 // pred_check_branch
        %138 = sbr.rel (%p135) target = $region12
      $region11: #{tpu_custom_call.1} parent=5 // pred_region
        %s139 = ssub.s32 %s15, 1
        // Predicated region
        $region13: #{tpu_custom_call.1} parent=11 // pred_check
          %p140 = pneg %p76
        $region14: #{tpu_custom_call.1} parent=11 // pred_check_branch
          %142 = sbr.rel (%p140) target = $region16
        $region15: #{tpu_custom_call.1} parent=11 // pred_region
          _
        $region16: #{tpu_custom_call.1} parent=11 // pred_fallthru
          _
        // Predicated region
        $region17: #{tpu_custom_call.1} parent=11 // pred_check
          %p143 = pneg %p97
        $region18: #{tpu_custom_call.1} parent=11 // pred_check_branch
          %145 = sbr.rel (%p143) target = $region20
        $region19: #{tpu_custom_call.1} parent=11 // pred_region
          _
        $region20: #{tpu_custom_call.1} parent=11 // pred_fallthru
          _
      $region12: #{tpu_custom_call.1} parent=5 // pred_fallthru
        _
      %p146 = scmp.lt.s32.totalorder %s15, 2
      // Predicated region
      $region21: #{tpu_custom_call.1} parent=5 // pred_check
        %p147 = pneg %p146
      $region22: #{tpu_custom_call.1} parent=5 // pred_check_branch
        %149 = sbr.rel (%p147) target = $region24
      $region23: #{tpu_custom_call.1} parent=5 // pred_region
        // Predicated region
        $region25: #{tpu_custom_call.1} parent=23 // pred_check
          %p150 = pneg %p49
        $region26: #{tpu_custom_call.1} parent=23 // pred_check_branch
          %152 = sbr.rel (%p150) target = $region28
        $region27: #{tpu_custom_call.1} parent=23 // pred_region
          %s153 = sand.u32 %s39, 1
          %s154 = scalar_lea.sflag [#allocation3], %s153
          %s155 = sand.u32 %s39, 1
          %s156 = smul.addr %s155, 8
          %s157 = scalar_lea.vmem [#allocation2], %s156
          %s159 = ssub.s32 128, 128
          %160 = vsyncadd %s154, %s159
          %s161 = sadd.s32 %s23, %s22
          %s162 = smul.addr %s161, 128
          %s163 = scalar_lea.hbm %s0, %s162
          %s165 = sshll.u32 %s157, 4
          %s166 = int_to_ptr.vmem [resolvable:$true] %s165
          %168 = dma.hbm_to_vmem [thread:$0]  %s163, 128, %s166, %s154
        $region28: #{tpu_custom_call.1} parent=23 // pred_fallthru
          _
      $region24: #{tpu_custom_call.1} parent=5 // pred_fallthru
        _
      %p169 = scmp.le.s32.totalorder 1, %s15
      %p170 = scmp.lt.s32.totalorder %s15, 3
      %p171 = pnand %p169, %p170
      %p172 = pneg %p171
      // Predicated region
      $region29: #{tpu_custom_call.1} parent=5 // pred_check
        _
      $region30: #{tpu_custom_call.1} parent=5 // pred_check_branch
        %174 = sbr.rel (%p171) target = $region32
      $region31: #{tpu_custom_call.1} parent=5 // pred_region
        %s175 = ssub.s32 %s15, 1
        %s176 = sand.u32 %s42, 1
        %s177 = scalar_lea.sflag [#allocation3], %s176
        %s178 = sand.u32 %s42, 1
        %s179 = smul.addr %s178, 8
        %s180 = scalar_lea.vmem [#allocation2], %s179
        // Predicated region
        $region33: #{tpu_custom_call.1} parent=31 // pred_check
          %p181 = pneg %p55
        $region34: #{tpu_custom_call.1} parent=31 // pred_check_branch
          %183 = sbr.rel (%p181) target = $region36
        $region35: #{tpu_custom_call.1} parent=31 // pred_region
          %184 = dma.done %s177, 128
        $region36: #{tpu_custom_call.1} parent=31 // pred_fallthru
          _
        %s185 = sand.u32 %s42, 1
        %s186 = scalar_lea.sflag [#allocation3], %s185
        %s187 = sand.u32 %s42, 1
        %s188 = smul.addr %s187, 8
        %s189 = scalar_lea.vmem [#allocation2], %s188
        %p190 = pneg %p55
        %p191 = pneg %p52
        %p192 = pneg %p76
        %p193 = pneg %p73
        %p194 = pneg %p97
        %p195 = pneg %p94
        %p196 = pneg %p125
        %p197 = pneg %p122
        %s198 = sand.u32 %s112, 1
        %s199 = scalar_lea.sflag [#allocation4], %s198
        %s200 = sand.u32 %s112, 1
        %s201 = smul.addr %s200, 8
        %s202 = scalar_lea.vmem [#allocation5], %s201
        %v203 = vld [vmem:[%s180] sm:$0xff]
        %v204 = vld [vmem:[%s1] sm:$0xff]
        %v205 = vld [vmem:[%s2] sm:$0xff]
        %207 = vset.pattern.permute.xlu0 0
        %208 = vperm.xlu0 %207, %v205
        %v209 = vpop.permute.xlu0 %208
        %v211 = vadd.f32 %v209, 0.0
        %213 = vset.pattern.permute.xlu0 0
        %214 = vperm.xlu0 %213, %v204
        %v215 = vpop.permute.xlu0 %214
        %v217 = vlaneseq
        %v218 = vshrl.u32 %v217, 7
        %v219 = vsub.s32 0, %v218
        %v220 = vrot.slane %v203, %v219
        %v221 = vmul.f32 %v215, %v220
        %v222 = vadd.f32 %v211, %v221
        %223 = vset.pattern.permute.xlu0 1
        %224 = vperm.xlu0 %223, %v204
        %v225 = vpop.permute.xlu0 %224
        %v227 = vlaneseq
        %v228 = vshrl.u32 %v227, 7
        %v229 = vsub.s32 1, %v228
        %v230 = vrot.slane %v203, %v229
        %v231 = vmul.f32 %v225, %v230
        %v232 = vadd.f32 %v222, %v231
        %233 = vset.pattern.permute.xlu0 2
        %234 = vperm.xlu0 %233, %v204
        %v235 = vpop.permute.xlu0 %234
        %v237 = vlaneseq
        %v238 = vshrl.u32 %v237, 7
        %v239 = vsub.s32 2, %v238
        %v240 = vrot.slane %v203, %v239
        %v241 = vmul.f32 %v235, %v240
        %v242 = vadd.f32 %v232, %v241
        %243 = vset.pattern.permute.xlu0 3
        %244 = vperm.xlu0 %243, %v204
        %v245 = vpop.permute.xlu0 %244
        %v247 = vlaneseq
        %v248 = vshrl.u32 %v247, 7
        %v249 = vsub.s32 3, %v248
        %v250 = vrot.slane %v203, %v249
        %v251 = vmul.f32 %v245, %v250
        %v252 = vadd.f32 %v242, %v251
        %253 = vset.pattern.permute.xlu0 4
        %254 = vperm.xlu0 %253, %v204
        %v255 = vpop.permute.xlu0 %254
        %v257 = vlaneseq
        %v258 = vshrl.u32 %v257, 7
        %v259 = vsub.s32 4, %v258
        %v260 = vrot.slane %v203, %v259
        %v261 = vmul.f32 %v255, %v260
        %v262 = vadd.f32 %v252, %v261
        %263 = vset.pattern.permute.xlu0 5
        %264 = vperm.xlu0 %263, %v204
        %v265 = vpop.permute.xlu0 %264
        %v267 = vlaneseq
        %v268 = vshrl.u32 %v267, 7
        %v269 = vsub.s32 5, %v268
        %v270 = vrot.slane %v203, %v269
        %v271 = vmul.f32 %v265, %v270
        %v272 = vadd.f32 %v262, %v271
        %273 = vset.pattern.permute.xlu0 6
        %274 = vperm.xlu0 %273, %v204
        %v275 = vpop.permute.xlu0 %274
        %v277 = vlaneseq
        %v278 = vshrl.u32 %v277, 7
        %v279 = vsub.s32 6, %v278
        %v280 = vrot.slane %v203, %v279
        %v281 = vmul.f32 %v275, %v280
        %v282 = vadd.f32 %v272, %v281
        %283 = vset.pattern.permute.xlu0 7
        %284 = vperm.xlu0 %283, %v204
        %v285 = vpop.permute.xlu0 %284
        %v287 = vlaneseq
        %v288 = vshrl.u32 %v287, 7
        %v289 = vsub.s32 7, %v288
        %v290 = vrot.slane %v203, %v289
        %v291 = vmul.f32 %v285, %v290
        %v292 = vadd.f32 %v282, %v291
        %293 = vst [vmem:[%s202] sm:$0xff] %v292
        %s294 = sand.u32 %s112, 1
        %s295 = scalar_lea.sflag [#allocation4], %s294
        %s296 = sand.u32 %s112, 1
        %s297 = smul.addr %s296, 8
        %s298 = scalar_lea.vmem [#allocation5], %s297
        // Predicated region
        $region37: #{tpu_custom_call.1} parent=31 // pred_check
          %p299 = pneg %p122
        $region38: #{tpu_custom_call.1} parent=31 // pred_check_branch
          %301 = sbr.rel (%p299) target = $region40
        $region39: #{tpu_custom_call.1} parent=31 // pred_region
          %s303 = ssub.s32 128, 128
          %304 = vsyncadd %s295, %s303
          %s305 = sadd.s32 %s25, %s24
          %s306 = smul.addr %s305, 128
          %s307 = scalar_lea.hbm %s3, %s306
          %s309 = sshll.u32 %s298, 4
          %s310 = int_to_ptr.vmem [resolvable:$true] %s309
          %312 = dma.vmem_to_hbm [thread:$0]  %s310, 128, %s307, %s295
        $region40: #{tpu_custom_call.1} parent=31 // pred_fallthru
          _
      $region32: #{tpu_custom_call.1} parent=5 // pred_fallthru
        _
      %p313 = scmp.le.s32.totalorder 2, %s15
      // Predicated region
      $region41: #{tpu_custom_call.1} parent=5 // pred_check
        %p314 = pneg %p313
      $region42: #{tpu_custom_call.1} parent=5 // pred_check_branch
        %316 = sbr.rel (%p314) target = $region44
      $region43: #{tpu_custom_call.1} parent=5 // pred_region
        %s317 = ssub.s32 %s15, 2
        // Predicated region
        $region45: #{tpu_custom_call.1} parent=43 // pred_check
          %p318 = pneg %p128
        $region46: #{tpu_custom_call.1} parent=43 // pred_check_branch
          %320 = sbr.rel (%p318) target = $region48
        $region47: #{tpu_custom_call.1} parent=43 // pred_region
          %s321 = sand.u32 %s113, 1
          %s322 = scalar_lea.sflag [#allocation4], %s321
          %s323 = sand.u32 %s113, 1
          %s324 = smul.addr %s323, 8
          %s325 = scalar_lea.vmem [#allocation5], %s324
          %326 = dma.done %s322, 128
        $region48: #{tpu_custom_call.1} parent=43 // pred_fallthru
          _
      $region44: #{tpu_custom_call.1} parent=5 // pred_fallthru
        _
    $region6: #{tpu_custom_call.1} parent=1 // loop_footer
      %s19 = sadd.s32 1, %s15
    $region7: #{tpu_custom_call.1} parent=1 // loop_footer_branch
      %14 = sbr.rel target = $region3
    $region8: #{tpu_custom_call.1} parent=1 // loop_exit
      _
    %327 = vsyncpa [#allocation3], 1
    %s328 = scalar_lea.sflag [#allocation3], 1
    %329 = vsyncpa %s328, 1
    %330 = vsyncpa [#allocation4], 1
    %s331 = scalar_lea.sflag [#allocation4], 1
    %332 = vsyncpa %s331, 1

</llo_original>
